<compile_context>
chip_gen: v6e
topology: v6e:2x2x1
jax: 0.10.0
libtpu: 0.0.40
codegen_flags: <defaults>
</compile_context>

<pallas_src>
import functools

import jax
import jax.numpy as jnp
import numpy as np
from jax.experimental import pallas as pl
from jax.experimental.pallas import tpu as pltpu

_VMEM_LIMIT = 32 * 1024 * 1024


# --------------------------------------------------------------------------
# Pallas kernels
# --------------------------------------------------------------------------

def _mm_bias_kernel(a_ref, b_ref, bias_ref, o_ref, acc_ref, *, relu):
    """out = act(A @ B + bias); K is grid axis 2 (fp32 accumulator)."""
    @pl.when(pl.program_id(2) == 0)
    def _():
        acc_ref[...] = jnp.zeros_like(acc_ref)

    acc_ref[...] += jnp.dot(a_ref[...], b_ref[...],
                            preferred_element_type=jnp.float32)

    @pl.when(pl.program_id(2) == pl.num_programs(2) - 1)
    def _():
        y = acc_ref[...] + bias_ref[0:1, :]
        if relu:
            y = jnp.maximum(y, 0.0)
        o_ref[...] = y.astype(o_ref.dtype)


def _conv3x3_s1_kernel(*refs, Wp, H, W, relu, has_res, pool):
    """Fused 3x3/stride-1 conv + folded-BN bias (+residual) (+ReLU) (+avgpool).

    x_ref holds one whole zero-padded image as a flat (Mp, Cin) block with
    Mp = (H+3)*(W+2).  For tap (ti, tj) the im2col rows are simply rows
    [ti*Wp + tj, ti*Wp + tj + H*Wp) of that block, so the 9 taps are 9 MXU
    matmuls with constant row offsets -- no im2col materialisation in HBM.
    Output rows whose flat index wraps into the width padding are garbage;
    they are masked to zero and (shifted by Wp+1) land exactly on the zero
    padding positions of the padded-layout output, so the next stride-1 conv
    consumes this output directly with no XLA pad/slice copy.
    """
    if has_res:
        x_ref, w_ref, b_ref, m_ref, r_ref, o_ref = refs
    else:
        x_ref, w_ref, b_ref, m_ref, o_ref = refs
        r_ref = None

    M = H * Wp
    tn = w_ref.shape[2]

    acc = jnp.zeros((M, tn), jnp.float32)
    # TODO(synk): pre-pack weights as (3, 3*Cin, Oc) and concatenate the 3 taps
    # of each kernel row along K in-kernel to triple MXU K-occupancy on the
    # 64/128-channel layers.
    for t in range(9):
        ti, tj = divmod(t, 3)
        off = ti * Wp + tj
        a = x_ref[0, off:off + M, :]                       # (M, Cin) bf16
        acc = acc + jnp.dot(a, w_ref[t], preferred_element_type=jnp.float32)

    y = acc + b_ref[0:1, :]
    if has_res:
        y = y + r_ref[0, Wp + 1:Wp + 1 + M, :].astype(jnp.float32)
    if relu:
        y = jnp.maximum(y, 0.0)
    y = y * m_ref[...]          # zero the wrapped (garbage) width-pad columns

    if pool:
        # Global average pool fused into the epilogue: garbage columns are
        # already zero, so summing all M rows / (H*W) is the exact mean.
        o_ref[0] = (jnp.sum(y, axis=0, keepdims=True)
                    * (1.0 / (H * W))).astype(o_ref.dtype)
    else:
        Mp = (H + 3) * Wp
        o_ref[0, 0:Wp + 1, :] = jnp.zeros((Wp + 1, tn), o_ref.dtype)
        o_ref[0, Wp + 1:Wp + 1 + M, :] = y.astype(o_ref.dtype)
        o_ref[0, Wp + 1 + M:Mp, :] = jnp.zeros((2 * Wp - 1, tn), o_ref.dtype)


def _maxpool3x3_s2_kernel(x_ref, o_ref, *, Ho, Wo, C):
    """3x3 / stride-2 max pool with all 9 window taps taken inside the kernel.

    Input block is the -inf-padded image with the H phase folded into a
    size-2 dim and the W phase folded into channels (free reshape in XLA),
    so every tap is a static unit-stride slice.  Output is written in the
    zero-padded layout expected by the first fused conv of layer1.
    """
    a = x_ref[0]                         # (Ho+1, 2, Wo+1, 2C)
    row_e = a[:, 0]                      # even padded rows  (Ho+1, Wo+1, 2C)
    row_o = a[:, 1]                      # odd  padded rows
    rm = jnp.maximum(jnp.maximum(row_e[0:Ho], row_o[0:Ho]), row_e[1:Ho + 1])
    col_e = rm[:, :, 0:C]                # even padded cols  (Ho, Wo+1, C)
    col_o = rm[:, :, C:2 * C]            # odd  padded cols
    out = jnp.maximum(jnp.maximum(col_e[:, 0:Wo], col_o[:, 0:Wo]),
                      col_e[:, 1:Wo + 1])
    o_ref[0] = jnp.zeros((Ho + 3, Wo + 2, C), o_ref.dtype)
    o_ref[0, 1:Ho + 1, 1:Wo + 1, :] = out.astype(o_ref.dtype)


# --------------------------------------------------------------------------
# Fused GEMM (im2col path: stem conv, stride-2 convs, fc)
# --------------------------------------------------------------------------

def _pick_tiles(M, K, N):
    tm = M if M <= 1024 else 1024
    if N % 256 == 0:
        tn = 256
    elif N % 128 == 0:
        tn = 128
    else:
        tn = N
    # Every GEMM in ResNet18 has K <= 2304 -> always a single K step.
    if K <= 2304:
        tk = K
    else:
        tk = next((d for d in (512, 384, 256, 128) if K % d == 0), K)
    return tm, tk, tn


def fused_matmul(a, b, bias, relu=False, out_dtype=jnp.bfloat16):
    """act((a @ b) + bias) with one Pallas MXU kernel (bf16 in, fp32 acc)."""
    M, K = a.shape
    Kb, N = b.shape
    assert K == Kb
    a = a.astype(jnp.bfloat16)
    b = b.astype(jnp.bfloat16)
    bias8 = jnp.broadcast_to(bias.astype(jnp.float32).reshape(1, N), (8, N))

    tm, tk, tn = _pick_tiles(M, K, N)
    grid = (pl.cdiv(M, tm), pl.cdiv(N, tn), pl.cdiv(K, tk))

    return pl.pallas_call(
        functools.partial(_mm_bias_kernel, relu=relu),
        out_shape=jax.ShapeDtypeStruct((M, N), out_dtype),
        grid_spec=pltpu.PrefetchScalarGridSpec(
            num_scalar_prefetch=0,
            grid=grid,
            in_specs=[
                pl.BlockSpec((tm, tk), lambda i, j, k: (i, k)),
                pl.BlockSpec((tk, tn), lambda i, j, k: (k, j)),
                pl.BlockSpec((8, tn), lambda i, j, k: (0, j)),
            ],
            out_specs=pl.BlockSpec((tm, tn), lambda i, j, k: (i, j)),
            scratch_shapes=[pltpu.VMEM((tm, tn), jnp.float32)],
        ),
        compiler_params=pltpu.CompilerParams(
            dimension_semantics=("parallel", "parallel", "arbitrary"),
            vmem_limit_bytes=_VMEM_LIMIT,
        ),
    )(a, b, bias8)


# --------------------------------------------------------------------------
# Padded-layout helpers and conv / pool wrappers (NHWC, bf16)
#
# Between stride-1 convs, activations live in a "padded layout"
# (N, H+3, W+2, C): the zero border a 3x3/pad-1 conv needs is already
# materialised (1 top / 2 bottom rows, 1 left / 1 right column; the extra
# bottom row absorbs the flat-offset overrun of the in-kernel im2col).
# --------------------------------------------------------------------------

def to_padded(x):
    """Clean (N, H, W, C) -> padded layout (N, H+3, W+2, C) (zero border)."""
    return jnp.pad(x, ((0, 0), (1, 2), (1, 1), (0, 0)))


def fused_conv3x3(xp, H, W, w, scale, bias, relu, residual_p=None, pool=False):
    """3x3 stride-1 conv + folded BN (+residual) (+ReLU) (+global-avg-pool).

    xp / residual_p: padded-layout (N, H+3, W+2, C) bf16.
    Returns padded-layout (N, H+3, W+2, Oc) bf16, or (N, Oc) f32 if pool.
    """
    N, _, _, Cin = xp.shape
    Oc = w.shape[0]
    Wp = W + 2
    Mp = (H + 3) * Wp
    M = H * Wp

    x_flat = xp.reshape(N, Mp, Cin)
    w9 = jnp.transpose(w, (2, 3, 1, 0)).reshape(9, Cin, Oc)
    w9 = (w9 * scale.astype(jnp.float32)[None, None, :]).astype(jnp.bfloat16)
    bias8 = jnp.broadcast_to(bias.astype(jnp.float32).reshape(1, Oc), (8, Oc))
    # 1.0 on valid output columns, 0.0 on the wrapped width-pad columns.
    colmask = np.tile(
        np.concatenate([np.ones((W,), np.float32), np.zeros((2,), np.float32)]),
        H)[:, None]                                            # (M, 1) const

    tn = 256 if (Oc > 256 and Oc % 256 == 0) else Oc
    grid = (N, Oc // tn)

    in_specs = [
        pl.BlockSpec((1, Mp, Cin), lambda n, j: (n, 0, 0)),
        pl.BlockSpec((9, Cin, tn), lambda n, j: (0, 0, j)),
        pl.BlockSpec((8, tn), lambda n, j: (0, j)),
        pl.BlockSpec((M, 1), lambda n, j: (0, 0)),
    ]
    operands = [x_flat, w9, bias8, jnp.asarray(colmask)]
    if residual_p is not None:
        in_specs.append(pl.BlockSpec((1, Mp, tn), lambda n, j: (n, 0, j)))
        operands.append(residual_p.reshape(N, Mp, Oc).astype(jnp.bfloat16))

    if pool:
        out_shape = jax.ShapeDtypeStruct((N, 1, Oc), jnp.float32)
        out_spec = pl.BlockSpec((1, 1, tn), lambda n, j: (n, 0, j))
    else:
        out_shape = jax.ShapeDtypeStruct((N, Mp, Oc), jnp.bfloat16)
        out_spec = pl.BlockSpec((1, Mp, tn), lambda n, j: (n, 0, j))

    out = pl.pallas_call(
        functools.partial(_conv3x3_s1_kernel, Wp=Wp, H=H, W=W, relu=relu,
                          has_res=residual_p is not None, pool=pool),
        out_shape=out_shape,
        grid_spec=pltpu.PrefetchScalarGridSpec(
            num_scalar_prefetch=0,
            grid=grid,
            in_specs=in_specs,
            out_specs=out_spec,
        ),
        compiler_params=pltpu.CompilerParams(
            dimension_semantics=("parallel", "parallel"),
            vmem_limit_bytes=_VMEM_LIMIT,
        ),
    )(*operands)

    if pool:
        return out.reshape(N, Oc)
    return out.reshape(N, H + 3, W + 2, Oc)


def maxpool3x3_s2(y):
    """Fused 3x3 / stride-2 / pad-1 max pool.

    y: clean (N, H, W, C) bf16.  Returns (padded-layout output, Ho, Wo).
    """
    N, H, W, C = y.shape
    Ho = (H - 1) // 2 + 1
    Wo = (W - 1) // 2 + 1
    Hp, Wp = 2 * Ho + 2, 2 * Wo + 2
    yp = jnp.pad(y, ((0, 0), (1, Hp - H - 1), (1, Wp - W - 1), (0, 0)),
                 constant_values=-jnp.inf)
    # Free (layout-preserving) reshape: fold H phase into a size-2 dim and
    # W phase into channels so all 9 taps are static slices in the kernel.
    yf = yp.reshape(N, Hp // 2, 2, Wp // 2, 2 * C)

    out = pl.pallas_call(
        functools.partial(_maxpool3x3_s2_kernel, Ho=Ho, Wo=Wo, C=C),
        out_shape=jax.ShapeDtypeStruct((N, Ho + 3, Wo + 2, C), y.dtype),
        grid_spec=pltpu.PrefetchScalarGridSpec(
            num_scalar_prefetch=0,
            grid=(N,),
            in_specs=[pl.BlockSpec((1, Hp // 2, 2, Wp // 2, 2 * C),
                                   lambda n: (n, 0, 0, 0, 0))],
            out_specs=pl.BlockSpec((1, Ho + 3, Wo + 2, C),
                                   lambda n: (n, 0, 0, 0)),
        ),
        compiler_params=pltpu.CompilerParams(
            dimension_semantics=("parallel",),
            vmem_limit_bytes=_VMEM_LIMIT,
        ),
    )(yf)
    return out, Ho, Wo


def conv_gemm(x, w, scale, bias, stride, padding, relu):
    """Conv2d + folded BN (+ReLU) via XLA im2col + Pallas GEMM (stem conv)."""
    N, H, W, Cin = x.shape
    Oc, Ic, kh, kw = w.shape
    Ho = (H + 2 * padding - kh) // stride + 1
    Wo = (W + 2 * padding - kw) // stride + 1
    xb = x.astype(jnp.bfloat16)
    if padding > 0:
        xb = jnp.pad(xb, ((0, 0), (padding, padding), (padding, padding), (0, 0)))
    # TODO(synk): pad K = kh*kw*Cin up to a multiple of 128 (stem conv only).
    taps = [xb[:, i:i + stride * (Ho - 1) + 1:stride,
               j:j + stride * (Wo - 1) + 1:stride, :]
            for i in range(kh) for j in range(kw)]
    patches = jnp.concatenate(taps, axis=-1).reshape(N * Ho * Wo, kh * kw * Cin)
    wm = jnp.transpose(w, (2, 3, 1, 0)).reshape(kh * kw * Ic, Oc)
    wm = (wm * scale.astype(jnp.float32)[None, :]).astype(jnp.bfloat16)
    out = fused_matmul(patches, wm, bias.astype(jnp.float32), relu=relu)
    return out.reshape(N, Ho, Wo, Oc)


def conv_s2_from_padded(xp, H, W, w, scale, bias, relu):
    """Stride-2 conv (3x3/pad-1 or 1x1/pad-0) reading a padded-layout input.

    The padded layout already contains the zero border, so the im2col taps
    are plain strided slices (no extra jnp.pad).  Only the 6 stage-transition
    convs take this path.
    """
    N = xp.shape[0]
    Cin = xp.shape[-1]
    Oc, Ic, kh, kw = w.shape
    p = 1 if kh == 3 else 0
    Ho = (H + 2 * p - kh) // 2 + 1
    Wo = (W + 2 * p - kw) // 2 + 1
    base = 1 - p                   # padded-layout offset of conv tap (0, 0)
    taps = [xp[:, base + ti:base + ti + 2 * (Ho - 1) + 1:2,
               base + tj:base + tj + 2 * (Wo - 1) + 1:2, :]
            for ti in range(kh) for tj in range(kw)]
    patches = jnp.concatenate(taps, axis=-1).reshape(N * Ho * Wo, kh * kw * Cin)
    wm = jnp.transpose(w, (2, 3, 1, 0)).reshape(kh * kw * Ic, Oc)
    wm = (wm * scale.astype(jnp.float32)[None, :]).astype(jnp.bfloat16)
    out = fused_matmul(patches, wm, bias.astype(jnp.float32), relu=relu)
    return out.reshape(N, Ho, Wo, Oc), Ho, Wo


# --------------------------------------------------------------------------
# Deterministic parameter construction (ResNet-18 shapes, eval-mode BN)
# --------------------------------------------------------------------------

class _KeyGen:
    def __init__(self, seed):
        self.key = jax.random.PRNGKey(seed)

    def __call__(self):
        self.key, k = jax.random.split(self.key)
        return k


def _conv_w(key, oc, ic, kh, kw):
    fan_in = ic * kh * kw
    return jax.random.normal(key, (oc, ic, kh, kw), jnp.float32) / jnp.sqrt(fan_in)


def _make_bn(key, c, eps=1e-5):
    k1, k2, k3 = jax.random.split(key, 3)
    gamma = 1.0 + 0.1 * jax.random.normal(k1, (c,), jnp.float32)
    beta = 0.1 * jax.random.normal(k2, (c,), jnp.float32)
    running_mean = 0.1 * jax.random.normal(k3, (c,), jnp.float32)
    running_var = jnp.ones((c,), jnp.float32)
    scale = gamma / jnp.sqrt(running_var + eps)
    bias = beta - running_mean * scale
    return scale, bias


def init_resnet18_params(in_channels=1, n_output=1000, seed=0):
    kg = _KeyGen(seed)
    params = {}
    params["conv1_w"] = _conv_w(kg(), 64, in_channels, 7, 7)
    params["bn1"] = _make_bn(kg(), 64)

    layers = []
    in_c = 64
    for li, out_c in enumerate([64, 128, 256, 512]):
        blocks = []
        for bi in range(2):
            stride = 2 if (li > 0 and bi == 0) else 1
            blk = {
                "stride": stride,
                "w1": _conv_w(kg(), out_c, in_c, 3, 3),
                "w2": _conv_w(kg(), out_c, out_c, 3, 3),
            }
            blk["s1"], blk["b1"] = _make_bn(kg(), out_c)
            blk["s2"], blk["b2"] = _make_bn(kg(), out_c)
            if stride != 1 or in_c != out_c:
                blk["dw"] = _conv_w(kg(), out_c, in_c, 1, 1)
                blk["ds"], blk["db"] = _make_bn(kg(), out_c)
            blocks.append(blk)
            in_c = out_c
        layers.append(blocks)
    params["layers"] = layers

    params["fc_w"] = jax.random.normal(kg(), (n_output, 512), jnp.float32) / jnp.sqrt(512.0)
    params["fc_b"] = 0.1 * jax.random.normal(kg(), (n_output,), jnp.float32)
    return params


# --------------------------------------------------------------------------
# Forward pass
# --------------------------------------------------------------------------

def _basic_block(xp, H, W, blk, pool_last=False):
    """Torchvision BasicBlock on a padded-layout input."""
    if blk["stride"] == 1:
        y1 = fused_conv3x3(xp, H, W, blk["w1"], blk["s1"], blk["b1"], relu=True)
        out = fused_conv3x3(y1, H, W, blk["w2"], blk["s2"], blk["b2"], relu=True,
                            residual_p=xp, pool=pool_last)
        return out, H, W
    # Stage-transition block: stride-2 main conv + 1x1 stride-2 downsample.
    y1, Ho, Wo = conv_s2_from_padded(xp, H, W, blk["w1"], blk["s1"], blk["b1"],
                                     relu=True)
    idn, _, _ = conv_s2_from_padded(xp, H, W, blk["dw"], blk["ds"], blk["db"],
                                    relu=False)
    out = fused_conv3x3(to_padded(y1), Ho, Wo, blk["w2"], blk["s2"], blk["b2"],
                        relu=True, residual_p=to_padded(idn), pool=pool_last)
    return out, Ho, Wo


def resnet18_forward(params, x_nchw):
    """x_nchw: (N, in_channels, H, W) float32 -> (N, n_output) float32."""
    # Single NCHW -> NHWC conversion; bf16 activations from here on.
    x = jnp.transpose(x_nchw, (0, 2, 3, 1)).astype(jnp.bfloat16)

    s1, b1 = params["bn1"]
    y = conv_gemm(x, params["conv1_w"], s1, b1, stride=2, padding=3, relu=True)
    xp, H, W = maxpool3x3_s2(y)

    layers = params["layers"]
    feat = None
    for li, blocks in enumerate(layers):
        for bi, blk in enumerate(blocks):
            last = (li == len(layers) - 1) and (bi == len(blocks) - 1)
            out, H, W = _basic_block(xp, H, W, blk, pool_last=last)
            if last:
                feat = out                    # (N, 512) f32, spatial mean fused
            else:
                xp = out

    logits = fused_matmul(feat, params["fc_w"].T, params["fc_b"],
                          relu=False, out_dtype=jnp.float32)
    return logits


if __name__ == "__main__":
    in_channels, n_output = 1, 1000
    x = jax.random.normal(jax.random.PRNGKey(0), (2, in_channels, 16, 16), jnp.float32)
    params = init_resnet18_params(in_channels=in_channels, n_output=n_output, seed=0)

    out = resnet18_forward(params, x)
    out = jax.block_until_ready(out)

    assert out.shape == (2, n_output), out.shape
    assert bool(jnp.all(jnp.isfinite(out)))
    print("KERNEL_OK")
</pallas_src>

<mosaic_0001>
module attributes {stable_mosaic.version = 11 : i64} {
  func.func @_mm_bias_kernel(%arg0: i32, %arg1: i32, %arg2: i32, %arg3: memref<128x49xbf16, #tpu.memory_space<vmem>>, %arg4: memref<49x64xbf16, #tpu.memory_space<vmem>>, %arg5: memref<8x64xf32, #tpu.memory_space<vmem>>, %arg6: memref<128x64xbf16, #tpu.memory_space<vmem>>, %arg7: memref<128x64xf32, #tpu.memory_space<vmem>>) attributes {dimension_semantics = [#tpu.dimension_semantics<parallel>, #tpu.dimension_semantics<parallel>, #tpu.dimension_semantics<arbitrary>], iteration_bounds = array<i64: 1, 1, 1>, scalar_prefetch = 0 : i64, scratch_operands = 1 : i64, tpu.core_type = #tpu.core_type<tc>, window_params = [{transform_indices = @transform_0, window_bounds = array<i64: 128, 49>}, {transform_indices = @transform_1, window_bounds = array<i64: 49, 64>}, {transform_indices = @transform_2, window_bounds = array<i64: 8, 64>}, {transform_indices = @transform_3, window_bounds = array<i64: 128, 64>}]} {
    %c0_i32 = arith.constant 0 : i32
    %0 = arith.cmpi eq, %arg2, %c0_i32 : i32
    %1 = arith.extui %0 : i1 to i32
    %c0_i32_0 = arith.constant 0 : i32
    %2 = arith.cmpi ne, %1, %c0_i32_0 : i32
    scf.if %2 {
      %cst_10 = arith.constant 0.000000e+00 : f32
      %12 = vector.broadcast %cst_10 : f32 to vector<128x64xf32>
      %c0_11 = arith.constant 0 : index
      %c0_12 = arith.constant 0 : index
      %13 = vector.load %arg7[%c0_11, %c0_12] : memref<128x64xf32, #tpu.memory_space<vmem>>, vector<128x64xf32>
      tpu.vector_store %arg7[%c0_11, %c0_12], %12 {strides = array<i32>} : memref<128x64xf32, #tpu.memory_space<vmem>>, vector<128x64xf32>,
    } else {
    }
    %c0 = arith.constant 0 : index
    %c0_1 = arith.constant 0 : index
    %3 = vector.load %arg7[%c0, %c0_1] : memref<128x64xf32, #tpu.memory_space<vmem>>, vector<128x64xf32>
    %c0_2 = arith.constant 0 : index
    %c0_3 = arith.constant 0 : index
    %4 = vector.load %arg3[%c0_2, %c0_3] : memref<128x49xbf16, #tpu.memory_space<vmem>>, vector<128x49xbf16>
    %c0_4 = arith.constant 0 : index
    %c0_5 = arith.constant 0 : index
    %5 = vector.load %arg4[%c0_4, %c0_5] : memref<49x64xbf16, #tpu.memory_space<vmem>>, vector<49x64xbf16>
    %cst = arith.constant dense<0.000000e+00> : vector<128x64xf32>
    %6 = tpu.matmul %4, %5, %cst {dimension_numbers = #tpu.dot_dimension_numbers<[1], [0], [0], [1], [0, 0, 1, 1], [], []>} : vector<128x49xbf16>, vector<49x64xbf16>, vector<128x64xf32> -> vector<128x64xf32>
    %7 = arith.addf %3, %6 : vector<128x64xf32>
    %c0_6 = arith.constant 0 : index
    %c0_7 = arith.constant 0 : index
    %8 = vector.load %arg7[%c0_6, %c0_7] : memref<128x64xf32, #tpu.memory_space<vmem>>, vector<128x64xf32>
    tpu.vector_store %arg7[%c0_6, %c0_7], %7 {strides = array<i32>} : memref<128x64xf32, #tpu.memory_space<vmem>>, vector<128x64xf32>,
    %c0_i32_8 = arith.constant 0 : i32
    %9 = arith.cmpi eq, %arg2, %c0_i32_8 : i32
    %10 = arith.extui %9 : i1 to i32
    %c0_i32_9 = arith.constant 0 : i32
    %11 = arith.cmpi ne, %10, %c0_i32_9 : i32
    scf.if %11 {
      %c0_10 = arith.constant 0 : index
      %c0_11 = arith.constant 0 : index
      %12 = vector.load %arg7[%c0_10, %c0_11] : memref<128x64xf32, #tpu.memory_space<vmem>>, vector<128x64xf32>
      %c0_12 = arith.constant 0 : index
      %c0_13 = arith.constant 0 : index
      %13 = vector.load %arg5[%c0_12, %c0_13] : memref<8x64xf32, #tpu.memory_space<vmem>>, vector<1x64xf32>
      %14 = vector.broadcast %13 : vector<1x64xf32> to vector<128x64xf32>
      %15 = arith.addf %12, %14 : vector<128x64xf32>
      %cst_14 = arith.constant 0.000000e+00 : f32
      %16 = vector.broadcast %cst_14 : f32 to vector<128x64xf32>
      %17 = arith.maximumf %15, %16 : vector<128x64xf32>
      %18 = arith.truncf %17 : vector<128x64xf32> to vector<128x64xbf16>
      %c0_15 = arith.constant 0 : index
      %c0_16 = arith.constant 0 : index
      %19 = vector.load %arg6[%c0_15, %c0_16] : memref<128x64xbf16, #tpu.memory_space<vmem>>, vector<128x64xbf16>
      tpu.vector_store %arg6[%c0_15, %c0_16], %18 {strides = array<i32>} : memref<128x64xbf16, #tpu.memory_space<vmem>>, vector<128x64xbf16>,
    } else {
    }
    return
  }
  func.func @transform_0(%arg0: i32, %arg1: i32, %arg2: i32) -> (i32, i32) {
    %c0_i32 = arith.constant 0 : i32
    return %arg0, %arg2 : i32, i32
  }
  func.func @transform_1(%arg0: i32, %arg1: i32, %arg2: i32) -> (i32, i32) {
    %c0_i32 = arith.constant 0 : i32
    return %arg2, %arg1 : i32, i32
  }
  func.func @transform_2(%arg0: i32, %arg1: i32, %arg2: i32) -> (i32, i32) {
    %c0_i32 = arith.constant 0 : i32
    %c0_i32_0 = arith.constant 0 : i32
    return %c0_i32, %arg1 : i32, i32
  }
  func.func @transform_3(%arg0: i32, %arg1: i32, %arg2: i32) -> (i32, i32) {
    %c0_i32 = arith.constant 0 : i32
    return %arg0, %arg1 : i32, i32
  }
}

</mosaic_0001>

<llo_original>
// kernel: tpu_custom_call.1
$region0: #{tpu_custom_call.1}
  #allocation0 [shape = 'u32[]', space=smem, size = 0x4, offset = 0x4, fixed_abs, tag = 'smem constant byte address 0x4 - core index']
  #allocation1 [shape = 'u32[144,128]{1,0:T(1,128)}', space=vmem, size = 0x12000, scoped, tag = 'internal scratch']
  #allocation2 [shape = 'f32[128,64]{1,0:T(8,128)}', space=vmem, size = 0x10000, scoped, tag = 'scratch operand']
  %s0 = inlined_call_operand.vmem [shape: bf16[128,49], index: 0, kind: input, shape index: {}]
  %s1 = inlined_call_operand.vmem [shape: bf16[49,64], index: 1, kind: input, shape index: {}]
  %s2 = inlined_call_operand.vmem [shape: f32[8,64], index: 2, kind: input, shape index: {}]
  %s3 = inlined_call_operand.vmem [shape: bf16[128,64], index: 3, kind: output, shape index: {}]
  %s4 = sld [smem:[#allocation0]]
  $region30: #{tpu_custom_call.1} parent=0
    _
  %s6 = ssub.s32 1, %s4
  %s7 = scalar_select 0, %s6, %s4
  // Predicated region
  $region2: #{tpu_custom_call.1} parent=0 // pred_check
    _
  $region3: #{tpu_custom_call.1} parent=0 // pred_check_branch
    %9 = sbr.rel (0) target = $region5
  $region4: #{tpu_custom_call.1} parent=0 // pred_region
    _
  $region5: #{tpu_custom_call.1} parent=0 // pred_fallthru
    _
  // Predicated region
  $region6: #{tpu_custom_call.1} parent=0 // pred_check
    _
  $region7: #{tpu_custom_call.1} parent=0 // pred_check_branch
    %11 = sbr.rel (0) target = $region9
  $region8: #{tpu_custom_call.1} parent=0 // pred_region
    _
  $region9: #{tpu_custom_call.1} parent=0 // pred_fallthru
    _
  // Predicated region
  $region10: #{tpu_custom_call.1} parent=0 // pred_check
    _
  $region11: #{tpu_custom_call.1} parent=0 // pred_check_branch
    %13 = sbr.rel (0) target = $region13
  $region12: #{tpu_custom_call.1} parent=0 // pred_region
    _
  $region13: #{tpu_custom_call.1} parent=0 // pred_fallthru
    _
  %p15 = scmp.eq.s32.totalorder 0, 0
  // Predicated region
  $region14: #{tpu_custom_call.1} parent=0 // pred_check
    %p16 = pneg %p15
  $region15: #{tpu_custom_call.1} parent=0 // pred_check_branch
    %18 = sbr.rel (%p16) target = $region17
  $region16: #{tpu_custom_call.1} parent=0 // pred_region
    %vm19 = vcmask 523264
    %20 = vst.msk [vmem:[#allocation2] sm:$0xff] %vm19, 0.0
    %21 = vst.msk [vmem:[#allocation2 + $0x8] sm:$0xff] %vm19, 0.0
    %22 = vst.msk [vmem:[#allocation2 + $0x10] sm:$0xff] %vm19, 0.0
    %23 = vst.msk [vmem:[#allocation2 + $0x18] sm:$0xff] %vm19, 0.0
    %24 = vst.msk [vmem:[#allocation2 + $0x20] sm:$0xff] %vm19, 0.0
    %25 = vst.msk [vmem:[#allocation2 + $0x28] sm:$0xff] %vm19, 0.0
    %26 = vst.msk [vmem:[#allocation2 + $0x30] sm:$0xff] %vm19, 0.0
    %27 = vst.msk [vmem:[#allocation2 + $0x38] sm:$0xff] %vm19, 0.0
    %28 = vst.msk [vmem:[#allocation2 + $0x40] sm:$0xff] %vm19, 0.0
    %29 = vst.msk [vmem:[#allocation2 + $0x48] sm:$0xff] %vm19, 0.0
    %30 = vst.msk [vmem:[#allocation2 + $0x50] sm:$0xff] %vm19, 0.0
    %31 = vst.msk [vmem:[#allocation2 + $0x58] sm:$0xff] %vm19, 0.0
    %32 = vst.msk [vmem:[#allocation2 + $0x60] sm:$0xff] %vm19, 0.0
    %33 = vst.msk [vmem:[#allocation2 + $0x68] sm:$0xff] %vm19, 0.0
    %34 = vst.msk [vmem:[#allocation2 + $0x70] sm:$0xff] %vm19, 0.0
    %35 = vst.msk [vmem:[#allocation2 + $0x78] sm:$0xff] %vm19, 0.0
  $region17: #{tpu_custom_call.1} parent=0 // pred_fallthru
    _
  %v36 = vld [vmem:[#allocation2] sm:$0xff]
  %v37 = vld [vmem:[#allocation2 + $0x8] sm:$0xff]
  %v38 = vld [vmem:[#allocation2 + $0x10] sm:$0xff]
  %v39 = vld [vmem:[#allocation2 + $0x18] sm:$0xff]
  %v40 = vld [vmem:[#allocation2 + $0x20] sm:$0xff]
  %v41 = vld [vmem:[#allocation2 + $0x28] sm:$0xff]
  %v42 = vld [vmem:[#allocation2 + $0x30] sm:$0xff]
  %v43 = vld [vmem:[#allocation2 + $0x38] sm:$0xff]
  %v44 = vld [vmem:[#allocation2 + $0x40] sm:$0xff]
  %v45 = vld [vmem:[#allocation2 + $0x48] sm:$0xff]
  %v46 = vld [vmem:[#allocation2 + $0x50] sm:$0xff]
  %v47 = vld [vmem:[#allocation2 + $0x58] sm:$0xff]
  %v48 = vld [vmem:[#allocation2 + $0x60] sm:$0xff]
  %v49 = vld [vmem:[#allocation2 + $0x68] sm:$0xff]
  %v50 = vld [vmem:[#allocation2 + $0x70] sm:$0xff]
  %v51 = vld [vmem:[#allocation2 + $0x78] sm:$0xff]
  %v52 = vld [vmem:[%s0] sm:$0xf]
  %v53 = vld [vmem:[%s0 + $0x4] sm:$0xf]
  %v54 = vld [vmem:[%s0 + $0x8] sm:$0xf]
  %v55 = vld [vmem:[%s0 + $0xc] sm:$0xf]
  %v56 = vld [vmem:[%s0 + $0x10] sm:$0xf]
  %v57 = vld [vmem:[%s0 + $0x14] sm:$0xf]
  %v58 = vld [vmem:[%s0 + $0x18] sm:$0xf]
  %v59 = vld [vmem:[%s0 + $0x1c] sm:$0xf]
  %v60 = vld [vmem:[%s0 + $0x20] sm:$0xf]
  %v61 = vld [vmem:[%s0 + $0x24] sm:$0xf]
  %v62 = vld [vmem:[%s0 + $0x28] sm:$0xf]
  %v63 = vld [vmem:[%s0 + $0x2c] sm:$0xf]
  %v64 = vld [vmem:[%s0 + $0x30] sm:$0xf]
  %v65 = vld [vmem:[%s0 + $0x34] sm:$0xf]
  %v66 = vld [vmem:[%s0 + $0x38] sm:$0xf]
  %v67 = vld [vmem:[%s0 + $0x3c] sm:$0xf]
  %v68 = vld [vmem:[%s1] sm:$0xf]
  %v69 = vld [vmem:[%s1 + $0x4] sm:$0xf]
  %v70 = vld [vmem:[%s1 + $0x8] sm:$0xf]
  %v71 = vld [vmem:[%s1 + $0xc] sm:$0xf]
  %v72 = vld [vmem:[%s1 + $0x10] sm:$0xf]
  %v73 = vld [vmem:[%s1 + $0x14] sm:$0xf]
  %v74 = vld [vmem:[%s1 + $0x18] sm:$0x1]
  %v91 = vunpack.c.l.b16 %v52
  %v92 = vunpack.c.l.b16 %v53
  %v93 = vunpack.c.l.b16 %v54
  %v94 = vunpack.c.l.b16 %v55
  %v95 = vunpack.c.l.b16 %v56
  %v96 = vunpack.c.l.b16 %v57
  %v97 = vunpack.c.l.b16 %v58
  %v98 = vunpack.c.l.b16 %v59
  %v99 = vunpack.c.l.b16 %v60
  %v100 = vunpack.c.l.b16 %v61
  %v101 = vunpack.c.l.b16 %v62
  %v102 = vunpack.c.l.b16 %v63
  %v103 = vunpack.c.l.b16 %v64
  %v104 = vunpack.c.l.b16 %v65
  %v105 = vunpack.c.l.b16 %v66
  %v106 = vunpack.c.l.b16 %v67
  %v107 = vpack.c.b16 %v92, %v91
  %v108 = vpack.c.b16 %v94, %v93
  %v109 = vpack.c.b16 %v96, %v95
  %v110 = vpack.c.b16 %v98, %v97
  %v111 = vpack.c.b16 %v100, %v99
  %v112 = vpack.c.b16 %v102, %v101
  %v113 = vpack.c.b16 %v104, %v103
  %v114 = vpack.c.b16 %v106, %v105
  %v122 = vunpack.c.l.b16 %v68
  %v123 = vunpack.c.l.b16 %v69
  %v124 = vunpack.c.l.b16 %v70
  %v125 = vunpack.c.l.b16 %v71
  %v126 = vunpack.c.l.b16 %v72
  %v127 = vunpack.c.l.b16 %v73
  %v128 = vunpack.c.l.b16 %v74
  %v129 = vpack.c.b16 %v123, %v122
  %v130 = vpack.c.b16 %v125, %v124
  %v131 = vpack.c.b16 %v127, %v126
  %v132 = vpack.c.b16 %v128, %v128
  %vm136 = vcmask 400384
  %v138 = vsel %vm136, %v107, 0
  %v141 = vsel %vm136, %v108, 0
  %v144 = vsel %vm136, %v109, 0
  %v147 = vsel %vm136, %v110, 0
  %v150 = vsel %vm136, %v111, 0
  %v153 = vsel %vm136, %v112, 0
  %v156 = vsel %vm136, %v113, 0
  %v159 = vsel %vm136, %v114, 0
  %vm161 = vcmask 1040384
  %v162 = vsel 0, 4294967295, 65535
  %v163 = vsel %vm161, %v162, 0
  %v165 = vand.u32 %v132, %v163
  %167 = vmatprep.subr.bf16.mxu0 0
  %168 = vmatpush1.bf16.msra.mxu0 0
  %169 = vmatprep.subr.bf16.mxu0 0
  %170 = vmatpush1.bf16.msra.mxu0 0
  %171 = vmatprep.subr.bf16.mxu0 0
  %172 = vmatpush1.bf16.msra.mxu0 0
  %173 = vmatprep.subr.bf16.mxu0 0
  %174 = vmatpush1.bf16.msra.mxu0 0
  %175 = vmatprep.subr.bf16.mxu0 0
  %176 = vmatpush1.bf16.msra.mxu0 %v165
  %177 = vmatprep.subr.bf16.mxu0 0
  %178 = vmatpush1.bf16.msra.mxu0 %v131
  %179 = vmatprep.subr.bf16.mxu0 0
  %180 = vmatpush1.bf16.msra.mxu0 %v130
  %181 = vmatprep.subr.bf16.mxu0 0
  %182 = vmatpush1.bf16.msra.mxu0 %v129
  %183 = vmatprep.subr.bf16.mxu0 0
  %184 = vmatpush2.bf16.msra.mxu0 0
  %185 = vmatprep.subr.bf16.mxu0 0
  %186 = vmatpush2.bf16.msra.mxu0 0
  %187 = vmatprep.subr.bf16.mxu0 0
  %188 = vmatpush2.bf16.msra.mxu0 0
  %189 = vmatprep.subr.bf16.mxu0 0
  %190 = vmatpush2.bf16.msra.mxu0 0
  %191 = vmatprep.subr.bf16.mxu0 0
  %192 = vmatpush2.bf16.msra.mxu0 0
  %193 = vmatprep.subr.bf16.mxu0 0
  %194 = vmatpush2.bf16.msra.mxu0 0
  %195 = vmatprep.subr.bf16.mxu0 0
  %196 = vmatpush2.bf16.msra.mxu0 0
  %197 = vmatprep.subr.bf16.mxu0 0
  %198 = vmatpush2.bf16.msra.mxu0 0
  %199 = vmatprep.mubr.bf16.mxu0 0
  %200 = vmatmul.mubr.bf16.gmra.mxu0 %v138
  %v201 = vpop.f32.mrf.mxu0
  %v202 = vadd.f32 0.0, %v201
  %v203 = vpop.f32.mrf.mxu0
  %v204 = vpop.f32.mrf.mxu0
  %v205 = vadd.f32 0.0, %v204
  %v206 = vpop.f32.mrf.mxu0
  %207 = vmatprep.mubr.bf16.mxu0 0
  %208 = vmatmul.mubr.bf16.gmra.mxu0 %v141
  %v209 = vpop.f32.mrf.mxu0
  %v210 = vadd.f32 0.0, %v209
  %v211 = vpop.f32.mrf.mxu0
  %v212 = vpop.f32.mrf.mxu0
  %v213 = vadd.f32 0.0, %v212
  %v214 = vpop.f32.mrf.mxu0
  %215 = vmatprep.mubr.bf16.mxu0 0
  %216 = vmatmul.mubr.bf16.gmra.mxu0 %v144
  %v217 = vpop.f32.mrf.mxu0
  %v218 = vadd.f32 0.0, %v217
  %v219 = vpop.f32.mrf.mxu0
  %v220 = vpop.f32.mrf.mxu0
  %v221 = vadd.f32 0.0, %v220
  %v222 = vpop.f32.mrf.mxu0
  %223 = vmatprep.mubr.bf16.mxu0 0
  %224 = vmatmul.mubr.bf16.gmra.mxu0 %v147
  %v225 = vpop.f32.mrf.mxu0
  %v226 = vadd.f32 0.0, %v225
  %v227 = vpop.f32.mrf.mxu0
  %v228 = vpop.f32.mrf.mxu0
  %v229 = vadd.f32 0.0, %v228
  %v230 = vpop.f32.mrf.mxu0
  %231 = vmatprep.mubr.bf16.mxu0 0
  %232 = vmatmul.mubr.bf16.gmra.mxu0 %v150
  %v233 = vpop.f32.mrf.mxu0
  %v234 = vadd.f32 0.0, %v233
  %v235 = vpop.f32.mrf.mxu0
  %v236 = vpop.f32.mrf.mxu0
  %v237 = vadd.f32 0.0, %v236
  %v238 = vpop.f32.mrf.mxu0
  %239 = vmatprep.mubr.bf16.mxu0 0
  %240 = vmatmul.mubr.bf16.gmra.mxu0 %v153
  %v241 = vpop.f32.mrf.mxu0
  %v242 = vadd.f32 0.0, %v241
  %v243 = vpop.f32.mrf.mxu0
  %v244 = vpop.f32.mrf.mxu0
  %v245 = vadd.f32 0.0, %v244
  %v246 = vpop.f32.mrf.mxu0
  %247 = vmatprep.mubr.bf16.mxu0 0
  %248 = vmatmul.mubr.bf16.gmra.mxu0 %v156
  %v249 = vpop.f32.mrf.mxu0
  %v250 = vadd.f32 0.0, %v249
  %v251 = vpop.f32.mrf.mxu0
  %v252 = vpop.f32.mrf.mxu0
  %v253 = vadd.f32 0.0, %v252
  %v254 = vpop.f32.mrf.mxu0
  %255 = vmatprep.mubr.bf16.mxu0 0
  %256 = vmatmul.mubr.bf16.gmra.mxu0 %v159
  %v257 = vpop.f32.mrf.mxu0
  %v258 = vadd.f32 0.0, %v257
  %v259 = vpop.f32.mrf.mxu0
  %v260 = vpop.f32.mrf.mxu0
  %v261 = vadd.f32 0.0, %v260
  %v262 = vpop.f32.mrf.mxu0
  %263 = vdwg.mxu0
  %v264 = vadd.f32 %v36, %v202
  %v265 = vadd.f32 %v37, %v205
  %v266 = vadd.f32 %v38, %v210
  %v267 = vadd.f32 %v39, %v213
  %v268 = vadd.f32 %v40, %v218
  %v269 = vadd.f32 %v41, %v221
  %v270 = vadd.f32 %v42, %v226
  %v271 = vadd.f32 %v43, %v229
  %v272 = vadd.f32 %v44, %v234
  %v273 = vadd.f32 %v45, %v237
  %v274 = vadd.f32 %v46, %v242
  %v275 = vadd.f32 %v47, %v245
  %v276 = vadd.f32 %v48, %v250
  %v277 = vadd.f32 %v49, %v253
  %v278 = vadd.f32 %v50, %v258
  %v279 = vadd.f32 %v51, %v261
  %vm280 = vcmask 523264
  %281 = vst.msk [vmem:[#allocation2] sm:$0xff] %vm280, %v264
  %282 = vst.msk [vmem:[#allocation2 + $0x8] sm:$0xff] %vm280, %v265
  %283 = vst.msk [vmem:[#allocation2 + $0x10] sm:$0xff] %vm280, %v266
  %284 = vst.msk [vmem:[#allocation2 + $0x18] sm:$0xff] %vm280, %v267
  %285 = vst.msk [vmem:[#allocation2 + $0x20] sm:$0xff] %vm280, %v268
  %286 = vst.msk [vmem:[#allocation2 + $0x28] sm:$0xff] %vm280, %v269
  %287 = vst.msk [vmem:[#allocation2 + $0x30] sm:$0xff] %vm280, %v270
  %288 = vst.msk [vmem:[#allocation2 + $0x38] sm:$0xff] %vm280, %v271
  %289 = vst.msk [vmem:[#allocation2 + $0x40] sm:$0xff] %vm280, %v272
  %290 = vst.msk [vmem:[#allocation2 + $0x48] sm:$0xff] %vm280, %v273
  %291 = vst.msk [vmem:[#allocation2 + $0x50] sm:$0xff] %vm280, %v274
  %292 = vst.msk [vmem:[#allocation2 + $0x58] sm:$0xff] %vm280, %v275
  %293 = vst.msk [vmem:[#allocation2 + $0x60] sm:$0xff] %vm280, %v276
  %294 = vst.msk [vmem:[#allocation2 + $0x68] sm:$0xff] %vm280, %v277
  %295 = vst.msk [vmem:[#allocation2 + $0x70] sm:$0xff] %vm280, %v278
  %296 = vst.msk [vmem:[#allocation2 + $0x78] sm:$0xff] %vm280, %v279
  // Predicated region
  $region18: #{tpu_custom_call.1} parent=0 // pred_check
    %p297 = pneg %p15
  $region19: #{tpu_custom_call.1} parent=0 // pred_check_branch
    %299 = sbr.rel (%p297) target = $region21
  $region20: #{tpu_custom_call.1} parent=0 // pred_region
    %v300 = vld [vmem:[#allocation2] sm:$0xff]
    %v301 = vld [vmem:[#allocation2 + $0x8] sm:$0xff]
    %v302 = vld [vmem:[#allocation2 + $0x10] sm:$0xff]
    %v303 = vld [vmem:[#allocation2 + $0x18] sm:$0xff]
    %v304 = vld [vmem:[#allocation2 + $0x20] sm:$0xff]
    %v305 = vld [vmem:[#allocation2 + $0x28] sm:$0xff]
    %v306 = vld [vmem:[#allocation2 + $0x30] sm:$0xff]
    %v307 = vld [vmem:[#allocation2 + $0x38] sm:$0xff]
    %v308 = vld [vmem:[#allocation2 + $0x40] sm:$0xff]
    %v309 = vld [vmem:[#allocation2 + $0x48] sm:$0xff]
    %v310 = vld [vmem:[#allocation2 + $0x50] sm:$0xff]
    %v311 = vld [vmem:[#allocation2 + $0x58] sm:$0xff]
    %v312 = vld [vmem:[#allocation2 + $0x60] sm:$0xff]
    %v313 = vld [vmem:[#allocation2 + $0x68] sm:$0xff]
    %v314 = vld [vmem:[#allocation2 + $0x70] sm:$0xff]
    %v315 = vld [vmem:[#allocation2 + $0x78] sm:$0xff]
    %v316 = vld [vmem:[%s2] sm:$0x1]
    %v317 = vlaneseq
    %v318 = vshrl.u32 %v317, 7
    %v319 = vsub.s32 0, %v318
    %v320 = vrot.slane %v316, %v319
    %v321 = vadd.f32 %v300, %v320
    %v322 = vadd.f32 %v301, %v320
    %v323 = vadd.f32 %v302, %v320
    %v324 = vadd.f32 %v303, %v320
    %v325 = vadd.f32 %v304, %v320
    %v326 = vadd.f32 %v305, %v320
    %v327 = vadd.f32 %v306, %v320
    %v328 = vadd.f32 %v307, %v320
    %v329 = vadd.f32 %v308, %v320
    %v330 = vadd.f32 %v309, %v320
    %v331 = vadd.f32 %v310, %v320
    %v332 = vadd.f32 %v311, %v320
    %v333 = vadd.f32 %v312, %v320
    %v334 = vadd.f32 %v313, %v320
    %v335 = vadd.f32 %v314, %v320
    %v336 = vadd.f32 %v315, %v320
    %v337 = vmax.f32 %v321, 0.0
    %v338 = vmax.f32 %v322, 0.0
    %v339 = vmax.f32 %v323, 0.0
    %v340 = vmax.f32 %v324, 0.0
    %v341 = vmax.f32 %v325, 0.0
    %v342 = vmax.f32 %v326, 0.0
    %v343 = vmax.f32 %v327, 0.0
    %v344 = vmax.f32 %v328, 0.0
    %v345 = vmax.f32 %v329, 0.0
    %v346 = vmax.f32 %v330, 0.0
    %v347 = vmax.f32 %v331, 0.0
    %v348 = vmax.f32 %v332, 0.0
    %v349 = vmax.f32 %v333, 0.0
    %v350 = vmax.f32 %v334, 0.0
    %v351 = vmax.f32 %v335, 0.0
    %v352 = vmax.f32 %v336, 0.0
    %v353 = vpack.c.bf16 %v338, %v337
    %v354 = vpack.c.bf16 %v340, %v339
    %v355 = vpack.c.bf16 %v342, %v341
    %v356 = vpack.c.bf16 %v344, %v343
    %v357 = vpack.c.bf16 %v346, %v345
    %v358 = vpack.c.bf16 %v348, %v347
    %v359 = vpack.c.bf16 %v350, %v349
    %v360 = vpack.c.bf16 %v352, %v351
    %v369 = vunpack.c.l.b16 %v353
    %v370 = vunpack.c.h.b16 %v353
    %v371 = vunpack.c.l.b16 %v354
    %v372 = vunpack.c.h.b16 %v354
    %v373 = vunpack.c.l.b16 %v355
    %v374 = vunpack.c.h.b16 %v355
    %v375 = vunpack.c.l.b16 %v356
    %v376 = vunpack.c.h.b16 %v356
    %v377 = vunpack.c.l.b16 %v357
    %v378 = vunpack.c.h.b16 %v357
    %v379 = vunpack.c.l.b16 %v358
    %v380 = vunpack.c.h.b16 %v358
    %v381 = vunpack.c.l.b16 %v359
    %v382 = vunpack.c.h.b16 %v359
    %v383 = vunpack.c.l.b16 %v360
    %v384 = vunpack.c.h.b16 %v360
    %v385 = vpack.c.b16 %v369, %v369
    %v386 = vpack.c.b16 %v370, %v370
    %v387 = vpack.c.b16 %v371, %v371
    %v388 = vpack.c.b16 %v372, %v372
    %v389 = vpack.c.b16 %v373, %v373
    %v390 = vpack.c.b16 %v374, %v374
    %v391 = vpack.c.b16 %v375, %v375
    %v392 = vpack.c.b16 %v376, %v376
    %v393 = vpack.c.b16 %v377, %v377
    %v394 = vpack.c.b16 %v378, %v378
    %v395 = vpack.c.b16 %v379, %v379
    %v396 = vpack.c.b16 %v380, %v380
    %v397 = vpack.c.b16 %v381, %v381
    %v398 = vpack.c.b16 %v382, %v382
    %v399 = vpack.c.b16 %v383, %v383
    %v400 = vpack.c.b16 %v384, %v384
    %vm417 = vcmask 519168
    %418 = vst.msk [vmem:[%s3] sm:$0xf] %vm417, %v385
    %419 = vst.msk [vmem:[%s3 + $0x4] sm:$0xf] %vm417, %v386
    %420 = vst.msk [vmem:[%s3 + $0x8] sm:$0xf] %vm417, %v387
    %421 = vst.msk [vmem:[%s3 + $0xc] sm:$0xf] %vm417, %v388
    %422 = vst.msk [vmem:[%s3 + $0x10] sm:$0xf] %vm417, %v389
    %423 = vst.msk [vmem:[%s3 + $0x14] sm:$0xf] %vm417, %v390
    %424 = vst.msk [vmem:[%s3 + $0x18] sm:$0xf] %vm417, %v391
    %425 = vst.msk [vmem:[%s3 + $0x1c] sm:$0xf] %vm417, %v392
    %426 = vst.msk [vmem:[%s3 + $0x20] sm:$0xf] %vm417, %v393
    %427 = vst.msk [vmem:[%s3 + $0x24] sm:$0xf] %vm417, %v394
    %428 = vst.msk [vmem:[%s3 + $0x28] sm:$0xf] %vm417, %v395
    %429 = vst.msk [vmem:[%s3 + $0x2c] sm:$0xf] %vm417, %v396
    %430 = vst.msk [vmem:[%s3 + $0x30] sm:$0xf] %vm417, %v397
    %431 = vst.msk [vmem:[%s3 + $0x34] sm:$0xf] %vm417, %v398
    %432 = vst.msk [vmem:[%s3 + $0x38] sm:$0xf] %vm417, %v399
    %433 = vst.msk [vmem:[%s3 + $0x3c] sm:$0xf] %vm417, %v400
  $region21: #{tpu_custom_call.1} parent=0 // pred_fallthru
    _
  // Predicated region
  $region22: #{tpu_custom_call.1} parent=0 // pred_check
    _
  $region23: #{tpu_custom_call.1} parent=0 // pred_check_branch
    %435 = sbr.rel (0) target = $region25
  $region24: #{tpu_custom_call.1} parent=0 // pred_region
    _
  $region25: #{tpu_custom_call.1} parent=0 // pred_fallthru
    _
  // Predicated region
  $region26: #{tpu_custom_call.1} parent=0 // pred_check
    _
  $region27: #{tpu_custom_call.1} parent=0 // pred_check_branch
    %437 = sbr.rel (0) target = $region29
  $region28: #{tpu_custom_call.1} parent=0 // pred_region
    _
  $region29: #{tpu_custom_call.1} parent=0 // pred_fallthru
    _

</llo_original>
